<compile_context>
chip_gen: v5e
topology: v5e:2x2
jax: 0.10.0
libtpu: 0.0.40
codegen_flags: <defaults>
</compile_context>

<pallas_src>
import math

import jax
import jax.numpy as jnp
from jax import lax
from jax.experimental import pallas as pl
from jax.experimental.pallas import tpu as pltpu


def _make_mha_kernel(num_heads, key_dim, val_dim):
    def kernel(q_ref, h_ref, wq_ref, wk_ref, wv_ref, wo_ref, out_ref):
        # q_ref: (Nq, D)          h_ref: (G, D)          (bf16)
        # wq_ref/wk_ref: (D, H*Kd)  wv_ref: (D, H*Vd)  wo_ref: (H*Vd, E)  (bf16)
        # out_ref: (Nq, E) f32
        q = q_ref[...]
        h = h_ref[...]
        mxu_dtype = q.dtype

        # Fused-head projections: one wide MXU pass each (lane axis = H*dim).
        # norm_factor is already folded into wq in the wrapper.
        Q = jnp.dot(q, wq_ref[...], preferred_element_type=jnp.float32).astype(mxu_dtype)
        K = jnp.dot(h, wk_ref[...], preferred_element_type=jnp.float32).astype(mxu_dtype)
        V = jnp.dot(h, wv_ref[...], preferred_element_type=jnp.float32).astype(mxu_dtype)

        wo = wo_ref[...]
        acc = jnp.zeros(out_ref.shape, jnp.float32)

        # Compile-time unrolled loop over heads (static lane/sublane slices).
        for hd in range(num_heads):
            qh = Q[:, hd * key_dim:(hd + 1) * key_dim]          # (Nq, Kd)
            kh = K[:, hd * key_dim:(hd + 1) * key_dim]          # (G,  Kd)
            vh = V[:, hd * val_dim:(hd + 1) * val_dim]          # (G,  Vd)

            # Scores: contract last dims directly (no K transpose).
            compat = lax.dot_general(
                qh, kh, (((1,), (1,)), ((), ())),
                preferred_element_type=jnp.float32)             # (Nq, G) f32

            # Numerically stable softmax, all elementwise math in f32.
            m = jnp.max(compat, axis=-1, keepdims=True)
            e = jnp.exp(compat - m)
            denom = jnp.sum(e, axis=-1, keepdims=True)
            attn = e * pl.reciprocal(denom, approx=True)        # (Nq, G) f32

            # Attention-weighted values, then per-head slice of the fused
            # output projection, accumulated in f32.
            head = jnp.dot(attn.astype(mxu_dtype), vh,
                           preferred_element_type=jnp.float32)  # (Nq, Vd)
            woh = wo[hd * val_dim:(hd + 1) * val_dim, :]        # (Vd, E)
            acc = acc + jnp.dot(head.astype(mxu_dtype), woh,
                                preferred_element_type=jnp.float32)

        out_ref[...] = acc.astype(out_ref.dtype)

    return kernel


def multi_head_attention(q, h, W_query, W_key, W_val, W_out,
                         *, mxu_dtype=jnp.bfloat16):
    """Pallas forward of MultiHeadAttention (mask=None path).

    q: (B, Nq, D)   h: (B, G, D)
    W_query/W_key: (H, D, Kd)   W_val: (H, D, Vd)   W_out: (H, Vd, E)
    returns: out (B, Nq, E) float32
    """
    B, Nq, D = q.shape
    _, G, _ = h.shape
    H, _, Kd = W_query.shape
    Vd = W_val.shape[-1]
    E = W_out.shape[-1]
    norm_factor = 1.0 / math.sqrt(Kd)

    # Fuse heads along the lane axis; fold norm_factor into W_query (f32),
    # then cast every MXU operand to bf16 (f32 accumulation in-kernel).
    wq = (W_query.astype(jnp.float32) * norm_factor)
    wq = jnp.transpose(wq, (1, 0, 2)).reshape(D, H * Kd).astype(mxu_dtype)
    wk = jnp.transpose(W_key, (1, 0, 2)).reshape(D, H * Kd).astype(mxu_dtype)
    wv = jnp.transpose(W_val, (1, 0, 2)).reshape(D, H * Vd).astype(mxu_dtype)
    wo = W_out.reshape(H * Vd, E).astype(mxu_dtype)
    qc = q.astype(mxu_dtype)
    hc = h.astype(mxu_dtype)

    kernel = _make_mha_kernel(H, Kd, Vd)

    out = pl.pallas_call(
        kernel,
        out_shape=jax.ShapeDtypeStruct((B, Nq, E), jnp.float32),
        grid_spec=pltpu.PrefetchScalarGridSpec(
            num_scalar_prefetch=0,
            grid=(B,),
            in_specs=[
                # per-batch activations
                pl.BlockSpec((None, Nq, D), lambda b: (b, 0, 0)),   # q
                pl.BlockSpec((None, G, D), lambda b: (b, 0, 0)),    # h
                # fused-head weights: constant index map -> VMEM resident
                pl.BlockSpec((D, H * Kd), lambda b: (0, 0)),        # W_query (fused)
                pl.BlockSpec((D, H * Kd), lambda b: (0, 0)),        # W_key   (fused)
                pl.BlockSpec((D, H * Vd), lambda b: (0, 0)),        # W_val   (fused)
                pl.BlockSpec((H * Vd, E), lambda b: (0, 0)),        # W_out   (fused)
            ],
            out_specs=pl.BlockSpec((None, Nq, E), lambda b: (b, 0, 0)),
        ),
        compiler_params=pltpu.CompilerParams(
            dimension_semantics=("parallel",),
        ),
    )(qc, hc, wq, wk, wv, wo)

    return out


def _reference(q, h, W_query, W_key, W_val, W_out):
    """Pure-JAX f32 reference mirroring the PyTorch forward (mask=None)."""
    B, Nq, D = q.shape
    _, G, _ = h.shape
    H, _, Kd = W_query.shape
    Vd = W_val.shape[-1]
    E = W_out.shape[-1]
    norm = 1.0 / math.sqrt(Kd)

    qflat = q.reshape(-1, D)
    hflat = h.reshape(-1, D)
    Q = jnp.einsum("nd,hdk->hnk", qflat, W_query).reshape(H, B, Nq, Kd)
    K = jnp.einsum("nd,hdk->hnk", hflat, W_key).reshape(H, B, G, Kd)
    V = jnp.einsum("nd,hdv->hnv", hflat, W_val).reshape(H, B, G, Vd)
    compat = norm * jnp.einsum("hbqk,hbgk->hbqg", Q, K)
    attn = jax.nn.softmax(compat, axis=-1)
    heads = jnp.einsum("hbqg,hbgv->hbqv", attn, V)
    out = jnp.einsum("bqhv,hve->bqe", jnp.transpose(heads, (1, 2, 0, 3)), W_out)
    return out


def init_params(key, num_heads, input_dim, embed_dim, val_dim=None, key_dim=None):
    if val_dim is None:
        val_dim = embed_dim // num_heads
    if key_dim is None:
        key_dim = val_dim
    k1, k2, k3, k4 = jax.random.split(key, 4)

    def uni(k, shape):
        stdv = 1.0 / math.sqrt(shape[-1])
        return jax.random.uniform(
            k, shape, dtype=jnp.float32, minval=-stdv, maxval=stdv
        )

    W_query = uni(k1, (num_heads, input_dim, key_dim))
    W_key = uni(k2, (num_heads, input_dim, key_dim))
    W_val = uni(k3, (num_heads, input_dim, val_dim))
    W_out = uni(k4, (num_heads, val_dim, embed_dim))
    return W_query, W_key, W_val, W_out


if __name__ == "__main__":
    key = jax.random.PRNGKey(0)
    kq, kh, kp = jax.random.split(key, 3)

    # Small shapes consistent with the module's forward
    batch_size = 2
    n_query = 8
    graph_size = 8
    input_dim = 32
    embed_dim = 32
    num_heads = 4

    q = jax.random.normal(kq, (batch_size, n_query, input_dim), dtype=jnp.float32)
    h = jax.random.normal(kh, (batch_size, graph_size, input_dim), dtype=jnp.float32)

    W_query, W_key, W_val, W_out = init_params(kp, num_heads, input_dim, embed_dim)

    out = multi_head_attention(q, h, W_query, W_key, W_val, W_out)
    out = jax.block_until_ready(out)

    ref_out = _reference(q, h, W_query, W_key, W_val, W_out)
    assert out.shape == (batch_size, n_query, embed_dim)
    # bf16 MXU operands + approx reciprocal => loosened tolerance vs f32 reference.
    assert jnp.allclose(out, ref_out, atol=5e-2, rtol=5e-2)

    print("KERNEL_OK")
</pallas_src>

<mosaic_0001>
module attributes {stable_mosaic.version = 11 : i64} {
  func.func @kernel(%arg0: i32, %arg1: memref<1x8x32xbf16, #tpu.memory_space<vmem>>, %arg2: memref<1x8x32xbf16, #tpu.memory_space<vmem>>, %arg3: memref<32x32xbf16, #tpu.memory_space<vmem>>, %arg4: memref<32x32xbf16, #tpu.memory_space<vmem>>, %arg5: memref<32x32xbf16, #tpu.memory_space<vmem>>, %arg6: memref<32x32xbf16, #tpu.memory_space<vmem>>, %arg7: memref<1x8x32xf32, #tpu.memory_space<vmem>>) attributes {dimension_semantics = [#tpu.dimension_semantics<parallel>], iteration_bounds = array<i64: 2>, scalar_prefetch = 0 : i64, scratch_operands = 0 : i64, tpu.core_type = #tpu.core_type<tc>, window_params = [{transform_indices = @transform_0, window_bounds = array<i64: 1, 8, 32>}, {transform_indices = @transform_1, window_bounds = array<i64: 1, 8, 32>}, {pipeline_mode = #tpu.pipeline_mode<synchronous>, transform_indices = @transform_2, window_bounds = array<i64: 32, 32>}, {pipeline_mode = #tpu.pipeline_mode<synchronous>, transform_indices = @transform_3, window_bounds = array<i64: 32, 32>}, {pipeline_mode = #tpu.pipeline_mode<synchronous>, transform_indices = @transform_4, window_bounds = array<i64: 32, 32>}, {pipeline_mode = #tpu.pipeline_mode<synchronous>, transform_indices = @transform_5, window_bounds = array<i64: 32, 32>}, {transform_indices = @transform_6, window_bounds = array<i64: 1, 8, 32>}]} {
    %c0 = arith.constant 0 : index
    %c0_0 = arith.constant 0 : index
    %c0_1 = arith.constant 0 : index
    %0 = vector.load %arg1[%c0, %c0_0, %c0_1] : memref<1x8x32xbf16, #tpu.memory_space<vmem>>, vector<1x8x32xbf16>
    %1 = vector.shape_cast %0 : vector<1x8x32xbf16> to vector<8x32xbf16>
    %c0_2 = arith.constant 0 : index
    %c0_3 = arith.constant 0 : index
    %c0_4 = arith.constant 0 : index
    %2 = vector.load %arg2[%c0_2, %c0_3, %c0_4] : memref<1x8x32xbf16, #tpu.memory_space<vmem>>, vector<1x8x32xbf16>
    %3 = vector.shape_cast %2 : vector<1x8x32xbf16> to vector<8x32xbf16>
    %c0_5 = arith.constant 0 : index
    %c0_6 = arith.constant 0 : index
    %4 = vector.load %arg3[%c0_5, %c0_6] : memref<32x32xbf16, #tpu.memory_space<vmem>>, vector<32x32xbf16>
    %cst = arith.constant dense<0.000000e+00> : vector<8x32xf32>
    %5 = tpu.matmul %1, %4, %cst {dimension_numbers = #tpu.dot_dimension_numbers<[1], [0], [0], [1], [0, 0, 1, 1], [], []>} : vector<8x32xbf16>, vector<32x32xbf16>, vector<8x32xf32> -> vector<8x32xf32>
    %6 = arith.truncf %5 : vector<8x32xf32> to vector<8x32xbf16>
    %c0_7 = arith.constant 0 : index
    %c0_8 = arith.constant 0 : index
    %7 = vector.load %arg4[%c0_7, %c0_8] : memref<32x32xbf16, #tpu.memory_space<vmem>>, vector<32x32xbf16>
    %cst_9 = arith.constant dense<0.000000e+00> : vector<8x32xf32>
    %8 = tpu.matmul %3, %7, %cst_9 {dimension_numbers = #tpu.dot_dimension_numbers<[1], [0], [0], [1], [0, 0, 1, 1], [], []>} : vector<8x32xbf16>, vector<32x32xbf16>, vector<8x32xf32> -> vector<8x32xf32>
    %9 = arith.truncf %8 : vector<8x32xf32> to vector<8x32xbf16>
    %c0_10 = arith.constant 0 : index
    %c0_11 = arith.constant 0 : index
    %10 = vector.load %arg5[%c0_10, %c0_11] : memref<32x32xbf16, #tpu.memory_space<vmem>>, vector<32x32xbf16>
    %cst_12 = arith.constant dense<0.000000e+00> : vector<8x32xf32>
    %11 = tpu.matmul %3, %10, %cst_12 {dimension_numbers = #tpu.dot_dimension_numbers<[1], [0], [0], [1], [0, 0, 1, 1], [], []>} : vector<8x32xbf16>, vector<32x32xbf16>, vector<8x32xf32> -> vector<8x32xf32>
    %12 = arith.truncf %11 : vector<8x32xf32> to vector<8x32xbf16>
    %c0_13 = arith.constant 0 : index
    %c0_14 = arith.constant 0 : index
    %13 = vector.load %arg6[%c0_13, %c0_14] : memref<32x32xbf16, #tpu.memory_space<vmem>>, vector<32x32xbf16>
    %cst_15 = arith.constant 0.000000e+00 : f32
    %14 = vector.broadcast %cst_15 : f32 to vector<8x32xf32>
    %15 = vector.extract_strided_slice %6 {offsets = [0, 0], sizes = [8, 8], strides = [1, 1]} : vector<8x32xbf16> to vector<8x8xbf16>
    %16 = vector.extract_strided_slice %9 {offsets = [0, 0], sizes = [8, 8], strides = [1, 1]} : vector<8x32xbf16> to vector<8x8xbf16>
    %17 = vector.extract_strided_slice %12 {offsets = [0, 0], sizes = [8, 8], strides = [1, 1]} : vector<8x32xbf16> to vector<8x8xbf16>
    %cst_16 = arith.constant dense<0.000000e+00> : vector<8x8xf32>
    %18 = tpu.matmul %15, %16, %cst_16 {dimension_numbers = #tpu.dot_dimension_numbers<[1], [1], [0], [0], [0, 0, 1, 0], [], []>} : vector<8x8xbf16>, vector<8x8xbf16>, vector<8x8xf32> -> vector<8x8xf32>
    %cst_17 = arith.constant dense<0xFF800000> : vector<8xf32>
    %19 = vector.multi_reduction <maximumf>, %18, %cst_17 [1] : vector<8x8xf32> to vector<8xf32>
    %20 = vector.shape_cast %19 : vector<8xf32> to vector<8x1xf32>
    %21 = vector.broadcast %20 : vector<8x1xf32> to vector<8x8xf32>
    %22 = arith.subf %18, %21 : vector<8x8xf32>
    %23 = math.exp %22 : vector<8x8xf32>
    %cst_18 = arith.constant dense<0.000000e+00> : vector<8xf32>
    %24 = vector.multi_reduction <add>, %23, %cst_18 [1] : vector<8x8xf32> to vector<8xf32>
    %25 = vector.shape_cast %24 : vector<8xf32> to vector<8x1xf32>
    %26 = tpu.reciprocal %25 {approx = true} : vector<8x1xf32> -> vector<8x1xf32>
    %27 = vector.broadcast %26 : vector<8x1xf32> to vector<8x8xf32>
    %28 = arith.mulf %23, %27 : vector<8x8xf32>
    %29 = arith.truncf %28 : vector<8x8xf32> to vector<8x8xbf16>
    %cst_19 = arith.constant dense<0.000000e+00> : vector<8x8xf32>
    %30 = tpu.matmul %29, %17, %cst_19 {dimension_numbers = #tpu.dot_dimension_numbers<[1], [0], [0], [1], [0, 0, 1, 1], [], []>} : vector<8x8xbf16>, vector<8x8xbf16>, vector<8x8xf32> -> vector<8x8xf32>
    %31 = vector.extract_strided_slice %13 {offsets = [0, 0], sizes = [8, 32], strides = [1, 1]} : vector<32x32xbf16> to vector<8x32xbf16>
    %32 = arith.truncf %30 : vector<8x8xf32> to vector<8x8xbf16>
    %cst_20 = arith.constant dense<0.000000e+00> : vector<8x32xf32>
    %33 = tpu.matmul %32, %31, %cst_20 {dimension_numbers = #tpu.dot_dimension_numbers<[1], [0], [0], [1], [0, 0, 1, 1], [], []>} : vector<8x8xbf16>, vector<8x32xbf16>, vector<8x32xf32> -> vector<8x32xf32>
    %34 = arith.addf %14, %33 : vector<8x32xf32>
    %35 = vector.extract_strided_slice %6 {offsets = [0, 8], sizes = [8, 8], strides = [1, 1]} : vector<8x32xbf16> to vector<8x8xbf16>
    %36 = vector.extract_strided_slice %9 {offsets = [0, 8], sizes = [8, 8], strides = [1, 1]} : vector<8x32xbf16> to vector<8x8xbf16>
    %37 = vector.extract_strided_slice %12 {offsets = [0, 8], sizes = [8, 8], strides = [1, 1]} : vector<8x32xbf16> to vector<8x8xbf16>
    %cst_21 = arith.constant dense<0.000000e+00> : vector<8x8xf32>
    %38 = tpu.matmul %35, %36, %cst_21 {dimension_numbers = #tpu.dot_dimension_numbers<[1], [1], [0], [0], [0, 0, 1, 0], [], []>} : vector<8x8xbf16>, vector<8x8xbf16>, vector<8x8xf32> -> vector<8x8xf32>
    %cst_22 = arith.constant dense<0xFF800000> : vector<8xf32>
    %39 = vector.multi_reduction <maximumf>, %38, %cst_22 [1] : vector<8x8xf32> to vector<8xf32>
    %40 = vector.shape_cast %39 : vector<8xf32> to vector<8x1xf32>
    %41 = vector.broadcast %40 : vector<8x1xf32> to vector<8x8xf32>
    %42 = arith.subf %38, %41 : vector<8x8xf32>
    %43 = math.exp %42 : vector<8x8xf32>
    %cst_23 = arith.constant dense<0.000000e+00> : vector<8xf32>
    %44 = vector.multi_reduction <add>, %43, %cst_23 [1] : vector<8x8xf32> to vector<8xf32>
    %45 = vector.shape_cast %44 : vector<8xf32> to vector<8x1xf32>
    %46 = tpu.reciprocal %45 {approx = true} : vector<8x1xf32> -> vector<8x1xf32>
    %47 = vector.broadcast %46 : vector<8x1xf32> to vector<8x8xf32>
    %48 = arith.mulf %43, %47 : vector<8x8xf32>
    %49 = arith.truncf %48 : vector<8x8xf32> to vector<8x8xbf16>
    %cst_24 = arith.constant dense<0.000000e+00> : vector<8x8xf32>
    %50 = tpu.matmul %49, %37, %cst_24 {dimension_numbers = #tpu.dot_dimension_numbers<[1], [0], [0], [1], [0, 0, 1, 1], [], []>} : vector<8x8xbf16>, vector<8x8xbf16>, vector<8x8xf32> -> vector<8x8xf32>
    %51 = vector.extract_strided_slice %13 {offsets = [8, 0], sizes = [8, 32], strides = [1, 1]} : vector<32x32xbf16> to vector<8x32xbf16>
    %52 = arith.truncf %50 : vector<8x8xf32> to vector<8x8xbf16>
    %cst_25 = arith.constant dense<0.000000e+00> : vector<8x32xf32>
    %53 = tpu.matmul %52, %51, %cst_25 {dimension_numbers = #tpu.dot_dimension_numbers<[1], [0], [0], [1], [0, 0, 1, 1], [], []>} : vector<8x8xbf16>, vector<8x32xbf16>, vector<8x32xf32> -> vector<8x32xf32>
    %54 = arith.addf %34, %53 : vector<8x32xf32>
    %55 = vector.extract_strided_slice %6 {offsets = [0, 16], sizes = [8, 8], strides = [1, 1]} : vector<8x32xbf16> to vector<8x8xbf16>
    %56 = vector.extract_strided_slice %9 {offsets = [0, 16], sizes = [8, 8], strides = [1, 1]} : vector<8x32xbf16> to vector<8x8xbf16>
    %57 = vector.extract_strided_slice %12 {offsets = [0, 16], sizes = [8, 8], strides = [1, 1]} : vector<8x32xbf16> to vector<8x8xbf16>
    %cst_26 = arith.constant dense<0.000000e+00> : vector<8x8xf32>
    %58 = tpu.matmul %55, %56, %cst_26 {dimension_numbers = #tpu.dot_dimension_numbers<[1], [1], [0], [0], [0, 0, 1, 0], [], []>} : vector<8x8xbf16>, vector<8x8xbf16>, vector<8x8xf32> -> vector<8x8xf32>
    %cst_27 = arith.constant dense<0xFF800000> : vector<8xf32>
    %59 = vector.multi_reduction <maximumf>, %58, %cst_27 [1] : vector<8x8xf32> to vector<8xf32>
    %60 = vector.shape_cast %59 : vector<8xf32> to vector<8x1xf32>
    %61 = vector.broadcast %60 : vector<8x1xf32> to vector<8x8xf32>
    %62 = arith.subf %58, %61 : vector<8x8xf32>
    %63 = math.exp %62 : vector<8x8xf32>
    %cst_28 = arith.constant dense<0.000000e+00> : vector<8xf32>
    %64 = vector.multi_reduction <add>, %63, %cst_28 [1] : vector<8x8xf32> to vector<8xf32>
    %65 = vector.shape_cast %64 : vector<8xf32> to vector<8x1xf32>
    %66 = tpu.reciprocal %65 {approx = true} : vector<8x1xf32> -> vector<8x1xf32>
    %67 = vector.broadcast %66 : vector<8x1xf32> to vector<8x8xf32>
    %68 = arith.mulf %63, %67 : vector<8x8xf32>
    %69 = arith.truncf %68 : vector<8x8xf32> to vector<8x8xbf16>
    %cst_29 = arith.constant dense<0.000000e+00> : vector<8x8xf32>
    %70 = tpu.matmul %69, %57, %cst_29 {dimension_numbers = #tpu.dot_dimension_numbers<[1], [0], [0], [1], [0, 0, 1, 1], [], []>} : vector<8x8xbf16>, vector<8x8xbf16>, vector<8x8xf32> -> vector<8x8xf32>
    %71 = vector.extract_strided_slice %13 {offsets = [16, 0], sizes = [8, 32], strides = [1, 1]} : vector<32x32xbf16> to vector<8x32xbf16>
    %72 = arith.truncf %70 : vector<8x8xf32> to vector<8x8xbf16>
    %cst_30 = arith.constant dense<0.000000e+00> : vector<8x32xf32>
    %73 = tpu.matmul %72, %71, %cst_30 {dimension_numbers = #tpu.dot_dimension_numbers<[1], [0], [0], [1], [0, 0, 1, 1], [], []>} : vector<8x8xbf16>, vector<8x32xbf16>, vector<8x32xf32> -> vector<8x32xf32>
    %74 = arith.addf %54, %73 : vector<8x32xf32>
    %75 = vector.extract_strided_slice %6 {offsets = [0, 24], sizes = [8, 8], strides = [1, 1]} : vector<8x32xbf16> to vector<8x8xbf16>
    %76 = vector.extract_strided_slice %9 {offsets = [0, 24], sizes = [8, 8], strides = [1, 1]} : vector<8x32xbf16> to vector<8x8xbf16>
    %77 = vector.extract_strided_slice %12 {offsets = [0, 24], sizes = [8, 8], strides = [1, 1]} : vector<8x32xbf16> to vector<8x8xbf16>
    %cst_31 = arith.constant dense<0.000000e+00> : vector<8x8xf32>
    %78 = tpu.matmul %75, %76, %cst_31 {dimension_numbers = #tpu.dot_dimension_numbers<[1], [1], [0], [0], [0, 0, 1, 0], [], []>} : vector<8x8xbf16>, vector<8x8xbf16>, vector<8x8xf32> -> vector<8x8xf32>
    %cst_32 = arith.constant dense<0xFF800000> : vector<8xf32>
    %79 = vector.multi_reduction <maximumf>, %78, %cst_32 [1] : vector<8x8xf32> to vector<8xf32>
    %80 = vector.shape_cast %79 : vector<8xf32> to vector<8x1xf32>
    %81 = vector.broadcast %80 : vector<8x1xf32> to vector<8x8xf32>
    %82 = arith.subf %78, %81 : vector<8x8xf32>
    %83 = math.exp %82 : vector<8x8xf32>
    %cst_33 = arith.constant dense<0.000000e+00> : vector<8xf32>
    %84 = vector.multi_reduction <add>, %83, %cst_33 [1] : vector<8x8xf32> to vector<8xf32>
    %85 = vector.shape_cast %84 : vector<8xf32> to vector<8x1xf32>
    %86 = tpu.reciprocal %85 {approx = true} : vector<8x1xf32> -> vector<8x1xf32>
    %87 = vector.broadcast %86 : vector<8x1xf32> to vector<8x8xf32>
    %88 = arith.mulf %83, %87 : vector<8x8xf32>
    %89 = arith.truncf %88 : vector<8x8xf32> to vector<8x8xbf16>
    %cst_34 = arith.constant dense<0.000000e+00> : vector<8x8xf32>
    %90 = tpu.matmul %89, %77, %cst_34 {dimension_numbers = #tpu.dot_dimension_numbers<[1], [0], [0], [1], [0, 0, 1, 1], [], []>} : vector<8x8xbf16>, vector<8x8xbf16>, vector<8x8xf32> -> vector<8x8xf32>
    %91 = vector.extract_strided_slice %13 {offsets = [24, 0], sizes = [8, 32], strides = [1, 1]} : vector<32x32xbf16> to vector<8x32xbf16>
    %92 = arith.truncf %90 : vector<8x8xf32> to vector<8x8xbf16>
    %cst_35 = arith.constant dense<0.000000e+00> : vector<8x32xf32>
    %93 = tpu.matmul %92, %91, %cst_35 {dimension_numbers = #tpu.dot_dimension_numbers<[1], [0], [0], [1], [0, 0, 1, 1], [], []>} : vector<8x8xbf16>, vector<8x32xbf16>, vector<8x32xf32> -> vector<8x32xf32>
    %94 = arith.addf %74, %93 : vector<8x32xf32>
    %c0_36 = arith.constant 0 : index
    %c0_37 = arith.constant 0 : index
    %c0_38 = arith.constant 0 : index
    %95 = vector.load %arg7[%c0_36, %c0_37, %c0_38] : memref<1x8x32xf32, #tpu.memory_space<vmem>>, vector<1x8x32xf32>
    %96 = vector.shape_cast %95 : vector<1x8x32xf32> to vector<8x32xf32>
    %97 = vector.shape_cast %94 : vector<8x32xf32> to vector<1x8x32xf32>
    tpu.vector_store %arg7[%c0_36, %c0_37, %c0_38], %97 {strides = array<i32>} : memref<1x8x32xf32, #tpu.memory_space<vmem>>, vector<1x8x32xf32>,
    return
  }
  func.func @transform_0(%arg0: i32) -> (i32, i32, i32) {
    %c0_i32 = arith.constant 0 : i32
    %c0_i32_0 = arith.constant 0 : i32
    %c0_i32_1 = arith.constant 0 : i32
    return %arg0, %c0_i32, %c0_i32_0 : i32, i32, i32
  }
  func.func @transform_1(%arg0: i32) -> (i32, i32, i32) {
    %c0_i32 = arith.constant 0 : i32
    %c0_i32_0 = arith.constant 0 : i32
    %c0_i32_1 = arith.constant 0 : i32
    return %arg0, %c0_i32, %c0_i32_0 : i32, i32, i32
  }
  func.func @transform_2(%arg0: i32) -> (i32, i32) {
    %c0_i32 = arith.constant 0 : i32
    %c0_i32_0 = arith.constant 0 : i32
    %c0_i32_1 = arith.constant 0 : i32
    return %c0_i32, %c0_i32_0 : i32, i32
  }
  func.func @transform_3(%arg0: i32) -> (i32, i32) {
    %c0_i32 = arith.constant 0 : i32
    %c0_i32_0 = arith.constant 0 : i32
    %c0_i32_1 = arith.constant 0 : i32
    return %c0_i32, %c0_i32_0 : i32, i32
  }
  func.func @transform_4(%arg0: i32) -> (i32, i32) {
    %c0_i32 = arith.constant 0 : i32
    %c0_i32_0 = arith.constant 0 : i32
    %c0_i32_1 = arith.constant 0 : i32
    return %c0_i32, %c0_i32_0 : i32, i32
  }
  func.func @transform_5(%arg0: i32) -> (i32, i32) {
    %c0_i32 = arith.constant 0 : i32
    %c0_i32_0 = arith.constant 0 : i32
    %c0_i32_1 = arith.constant 0 : i32
    return %c0_i32, %c0_i32_0 : i32, i32
  }
  func.func @transform_6(%arg0: i32) -> (i32, i32, i32) {
    %c0_i32 = arith.constant 0 : i32
    %c0_i32_0 = arith.constant 0 : i32
    %c0_i32_1 = arith.constant 0 : i32
    return %arg0, %c0_i32, %c0_i32_0 : i32, i32, i32
  }
}

</mosaic_0001>

<llo_original>
// kernel: tpu_custom_call.1
$region0: #{tpu_custom_call.1}
  #allocation0 [shape = 'u32[]', space=smem, size = 0x4, offset = 0x4, fixed_abs, tag = 'smem constant byte address 0x4 - core index']
  #allocation1 [shape = 'u32[72,128]{1,0:T(1,128)}', space=vmem, size = 0x9000, scoped, tag = 'internal scratch']
  %s0 = inlined_call_operand.hbm [shape: bf16[2,8,32], index: 0, kind: input, shape index: {}]
  %s1 = inlined_call_operand.hbm [shape: bf16[2,8,32], index: 1, kind: input, shape index: {}]
  %s2 = inlined_call_operand.hbm [shape: bf16[32,32], index: 2, kind: input, shape index: {}]
  %s3 = inlined_call_operand.hbm [shape: bf16[32,32], index: 3, kind: input, shape index: {}]
  %s4 = inlined_call_operand.hbm [shape: bf16[32,32], index: 4, kind: input, shape index: {}]
  %s5 = inlined_call_operand.hbm [shape: bf16[32,32], index: 5, kind: input, shape index: {}]
  %s6 = inlined_call_operand.hbm [shape: f32[2,8,32], index: 6, kind: output, shape index: {}]
  %s7 = sld [smem:[#allocation0]]
  $region81: #{tpu_custom_call.1} parent=0
    _
  %s9 = ssub.s32 1, %s7
  %s10 = scalar_select 0, %s9, %s7
  $region1: #{tpu_custom_call.1} parent=0
    #allocation2 [shape = 'u8[4096]{0}', space=vmem, size = 0x1000, scoped, tag = 'input window, operand 0']
    #allocation3 [shape = 's32[2]{0}', space=sflag, size = 0x8, scoped, tag = 'scoped memory for tpu_custom_call.1']
    #allocation4 [shape = 's32[2]{0}', space=sflag, size = 0x8, scoped, tag = 'scoped memory for tpu_custom_call.1']
    #allocation5 [shape = 'u8[4096]{0}', space=vmem, size = 0x1000, scoped, tag = 'input window, operand 1']
    #allocation6 [shape = 's32[2]{0}', space=sflag, size = 0x8, scoped, tag = 'scoped memory for tpu_custom_call.1']
    #allocation7 [shape = 'u8[8192]{0}', space=vmem, size = 0x2000, scoped, tag = 'input window, operand 2, single buffered']
    #allocation8 [shape = 'u8[8192]{0}', space=vmem, size = 0x2000, scoped, tag = 'input window, operand 3, single buffered']
    #allocation9 [shape = 's32[1]{0}', space=sflag, size = 0x4, scoped, tag = 'scoped memory for tpu_custom_call.1']
    #allocation10 [shape = 'u8[8192]{0}', space=vmem, size = 0x2000, scoped, tag = 'input window, operand 4, single buffered']
    #allocation11 [shape = 'u8[8192]{0}', space=vmem, size = 0x2000, scoped, tag = 'input window, operand 5, single buffered']
    #allocation12 [shape = 's32[1]{0}', space=sflag, size = 0x4, scoped, tag = 'scoped memory for tpu_custom_call.1']
    #allocation13 [shape = 'u8[8192]{0}', space=vmem, size = 0x2000, scoped, tag = 'output window, operand 0']
    %11 = vsyncpa [#allocation3], 0
    %s12 = scalar_lea.sflag [#allocation3], 1
    %13 = vsyncpa %s12, 0
    %14 = vsyncpa [#allocation6], 0
    %s15 = scalar_lea.sflag [#allocation6], 1
    %16 = vsyncpa %s15, 0
    %17 = vsyncpa [#allocation9], 0
    %18 = vsyncpa [#allocation12], 0
    %19 = vsyncpa [#allocation4], 0
    %s20 = scalar_lea.sflag [#allocation4], 1
    %21 = vsyncpa %s20, 0
    loop: start=0, step=1, limit=4
    $region2: #{tpu_custom_call.1} parent=1 // loop_pre_header
      _
    $region3: #{tpu_custom_call.1} parent=1 // loop_header
      %s23 = sphi 0, %s27
      %p24 = scmp.ge.s32.totalorder %s23, 4
      %s33 = sphi 0, %s35
      %s36 = sphi 0, %s33
      %s37 = sphi 0, %s36
      %s53 = sphi 0, %s37
      %s59 = sphi 0, %s61
      %s62 = sphi 0, %s59
      %s63 = sphi 0, %s62
      %s79 = sphi 0, %s63
      %s83 = sphi 0, %s83
      %s85 = sphi 0, %s83
      %s86 = sphi 0, %s85
      %s100 = sphi 0, %s86
      %s104 = sphi 0, %s104
      %s106 = sphi 0, %s104
      %s107 = sphi 0, %s106
      %s121 = sphi 0, %s107
      %s125 = sphi 0, %s125
      %s127 = sphi 0, %s125
      %s128 = sphi 0, %s127
      %s142 = sphi 0, %s128
      %s146 = sphi 0, %s146
      %s148 = sphi 0, %s146
      %s149 = sphi 0, %s148
      %s163 = sphi 0, %s149
      %s169 = sphi 0, %s171
      %s172 = sphi 0, %s169
      %s173 = sphi 0, %s172
      %s189 = sphi 0, %s173
    $region4: #{tpu_custom_call.1} parent=1 // loop_header_branch
      %26 = sbr.rel (%p24) target = $region8
    $region5: #{tpu_custom_call.1} parent=1 // loop_body
      %s28 = ssub.s32 %s23, 1
      %s29 = ssub.s32 %s23, 2
      %s30 = sadd.s32 %s23, 1
      %s31 = ssub.s32 %s23, %s30
      %p32 = scmp.eq.s32.totalorder %s31, 0
      %s34 = sadd.s32 %s33, 1
      %s35 = scalar_select %p32, %s33, %s34
      %p38 = pneg %p32
      %p39 = scmp.eq.s32.totalorder %s23, 1
      %p40 = por %p38, %p39
      %p41 = scmp.ne.s32.totalorder %s33, %s36
      %p42 = scmp.eq.s32.totalorder %s23, 0
      %p43 = por %p41, %p42
      %p44 = scmp.ne.s32.totalorder %s33, %s36
      %p45 = scmp.eq.s32.totalorder %s28, 1
      %p46 = por %p44, %p45
      %p47 = scmp.ne.s32.totalorder %s36, %s37
      %p48 = scmp.eq.s32.totalorder %s28, 0
      %p49 = por %p47, %p48
      %p50 = scmp.ne.s32.totalorder %s36, %s37
      %p51 = scmp.eq.s32.totalorder %s29, 1
      %p52 = por %p50, %p51
      %p54 = scmp.ne.s32.totalorder %s37, %s53
      %p55 = scmp.eq.s32.totalorder %s29, 0
      %p56 = por %p54, %p55
      %s57 = ssub.s32 %s23, %s30
      %p58 = scmp.eq.s32.totalorder %s57, 0
      %s60 = sadd.s32 %s59, 1
      %s61 = scalar_select %p58, %s59, %s60
      %p64 = pneg %p58
      %p65 = scmp.eq.s32.totalorder %s23, 1
      %p66 = por %p64, %p65
      %p67 = scmp.ne.s32.totalorder %s59, %s62
      %p68 = scmp.eq.s32.totalorder %s23, 0
      %p69 = por %p67, %p68
      %p70 = scmp.ne.s32.totalorder %s59, %s62
      %p71 = scmp.eq.s32.totalorder %s28, 1
      %p72 = por %p70, %p71
      %p73 = scmp.ne.s32.totalorder %s62, %s63
      %p74 = scmp.eq.s32.totalorder %s28, 0
      %p75 = por %p73, %p74
      %p76 = scmp.ne.s32.totalorder %s62, %s63
      %p77 = scmp.eq.s32.totalorder %s29, 1
      %p78 = por %p76, %p77
      %p80 = scmp.ne.s32.totalorder %s63, %s79
      %p81 = scmp.eq.s32.totalorder %s29, 0
      %p82 = por %p80, %p81
      %s84 = sadd.s32 %s83, 1
      %p87 = scmp.eq.s32.totalorder %s23, 1
      %p88 = scmp.ne.s32.totalorder %s83, %s85
      %p89 = scmp.eq.s32.totalorder %s23, 0
      %p90 = por %p88, %p89
      %p91 = scmp.ne.s32.totalorder %s83, %s85
      %p92 = scmp.eq.s32.totalorder %s28, 1
      %p93 = por %p91, %p92
      %p94 = scmp.ne.s32.totalorder %s85, %s86
      %p95 = scmp.eq.s32.totalorder %s28, 0
      %p96 = por %p94, %p95
      %p97 = scmp.ne.s32.totalorder %s85, %s86
      %p98 = scmp.eq.s32.totalorder %s29, 1
      %p99 = por %p97, %p98
      %p101 = scmp.ne.s32.totalorder %s86, %s100
      %p102 = scmp.eq.s32.totalorder %s29, 0
      %p103 = por %p101, %p102
      %s105 = sadd.s32 %s104, 1
      %p108 = scmp.eq.s32.totalorder %s23, 1
      %p109 = scmp.ne.s32.totalorder %s104, %s106
      %p110 = scmp.eq.s32.totalorder %s23, 0
      %p111 = por %p109, %p110
      %p112 = scmp.ne.s32.totalorder %s104, %s106
      %p113 = scmp.eq.s32.totalorder %s28, 1
      %p114 = por %p112, %p113
      %p115 = scmp.ne.s32.totalorder %s106, %s107
      %p116 = scmp.eq.s32.totalorder %s28, 0
      %p117 = por %p115, %p116
      %p118 = scmp.ne.s32.totalorder %s106, %s107
      %p119 = scmp.eq.s32.totalorder %s29, 1
      %p120 = por %p118, %p119
      %p122 = scmp.ne.s32.totalorder %s107, %s121
      %p123 = scmp.eq.s32.totalorder %s29, 0
      %p124 = por %p122, %p123
      %s126 = sadd.s32 %s125, 1
      %p129 = scmp.eq.s32.totalorder %s23, 1
      %p130 = scmp.ne.s32.totalorder %s125, %s127
      %p131 = scmp.eq.s32.totalorder %s23, 0
      %p132 = por %p130, %p131
      %p133 = scmp.ne.s32.totalorder %s125, %s127
      %p134 = scmp.eq.s32.totalorder %s28, 1
      %p135 = por %p133, %p134
      %p136 = scmp.ne.s32.totalorder %s127, %s128
      %p137 = scmp.eq.s32.totalorder %s28, 0
      %p138 = por %p136, %p137
      %p139 = scmp.ne.s32.totalorder %s127, %s128
      %p140 = scmp.eq.s32.totalorder %s29, 1
      %p141 = por %p139, %p140
      %p143 = scmp.ne.s32.totalorder %s128, %s142
      %p144 = scmp.eq.s32.totalorder %s29, 0
      %p145 = por %p143, %p144
      %s147 = sadd.s32 %s146, 1
      %p150 = scmp.eq.s32.totalorder %s23, 1
      %p151 = scmp.ne.s32.totalorder %s146, %s148
      %p152 = scmp.eq.s32.totalorder %s23, 0
      %p153 = por %p151, %p152
      %p154 = scmp.ne.s32.totalorder %s146, %s148
      %p155 = scmp.eq.s32.totalorder %s28, 1
      %p156 = por %p154, %p155
      %p157 = scmp.ne.s32.totalorder %s148, %s149
      %p158 = scmp.eq.s32.totalorder %s28, 0
      %p159 = por %p157, %p158
      %p160 = scmp.ne.s32.totalorder %s148, %s149
      %p161 = scmp.eq.s32.totalorder %s29, 1
      %p162 = por %p160, %p161
      %p164 = scmp.ne.s32.totalorder %s149, %s163
      %p165 = scmp.eq.s32.totalorder %s29, 0
      %p166 = por %p164, %p165
      %s167 = ssub.s32 %s23, %s30
      %p168 = scmp.eq.s32.totalorder %s167, 0
      %s170 = sadd.s32 %s169, 1
      %s171 = scalar_select %p168, %s169, %s170
      %p174 = pneg %p168
      %p175 = scmp.eq.s32.totalorder %s23, 1
      %p176 = por %p174, %p175
      %p177 = scmp.ne.s32.totalorder %s169, %s172
      %p178 = scmp.eq.s32.totalorder %s23, 0
      %p179 = por %p177, %p178
      %p180 = scmp.ne.s32.totalorder %s169, %s172
      %p181 = scmp.eq.s32.totalorder %s28, 1
      %p182 = por %p180, %p181
      %p183 = scmp.ne.s32.totalorder %s172, %s173
      %p184 = scmp.eq.s32.totalorder %s28, 0
      %p185 = por %p183, %p184
      %p186 = scmp.ne.s32.totalorder %s172, %s173
      %p187 = scmp.eq.s32.totalorder %s29, 1
      %p188 = por %p186, %p187
      %p190 = scmp.ne.s32.totalorder %s173, %s189
      %p191 = scmp.eq.s32.totalorder %s29, 0
      %p192 = por %p190, %p191
      %p193 = scmp.le.s32.totalorder 1, %s23
      %p194 = scmp.lt.s32.totalorder %s23, 3
      %p195 = pnand %p193, %p194
      %p196 = pneg %p195
      // Predicated region
      $region9: #{tpu_custom_call.1} parent=5 // pred_check
        _
      $region10: #{tpu_custom_call.1} parent=5 // pred_check_branch
        %198 = sbr.rel (%p195) target = $region12
      $region11: #{tpu_custom_call.1} parent=5 // pred_region
        %s199 = ssub.s32 %s23, 1
        // Predicated region
        $region13: #{tpu_custom_call.1} parent=11 // pred_check
          %p200 = pneg %p96
        $region14: #{tpu_custom_call.1} parent=11 // pred_check_branch
          %202 = sbr.rel (%p200) target = $region16
        $region15: #{tpu_custom_call.1} parent=11 // pred_region
          %204 = vsyncadd [#allocation6], 0
          %s205 = sshll.u32 %s2, 4
          %s206 = int_to_ptr.hbm [resolvable:$true] %s205
          %s207 = sshll.u32 [#allocation7], 4
          %s208 = int_to_ptr.vmem [resolvable:$true] %s207
          %213 = dma.hbm_to_vmem [thread:$0]  %s206, 256, %s208, [#allocation6], 64, 64, 4
        $region16: #{tpu_custom_call.1} parent=11 // pred_fallthru
          _
        // Predicated region
        $region17: #{tpu_custom_call.1} parent=11 // pred_check
          %p214 = pneg %p117
        $region18: #{tpu_custom_call.1} parent=11 // pred_check_branch
          %216 = sbr.rel (%p214) target = $region20
        $region19: #{tpu_custom_call.1} parent=11 // pred_region
          %218 = vsyncadd [#allocation9], 0
          %s219 = sshll.u32 %s3, 4
          %s220 = int_to_ptr.hbm [resolvable:$true] %s219
          %s221 = sshll.u32 [#allocation8], 4
          %s222 = int_to_ptr.vmem [resolvable:$true] %s221
          %227 = dma.hbm_to_vmem [thread:$0]  %s220, 256, %s222, [#allocation9], 64, 64, 4
        $region20: #{tpu_custom_call.1} parent=11 // pred_fallthru
          _
        // Predicated region
        $region21: #{tpu_custom_call.1} parent=11 // pred_check
          %p228 = pneg %p138
        $region22: #{tpu_custom_call.1} parent=11 // pred_check_branch
          %230 = sbr.rel (%p228) target = $region24
        $region23: #{tpu_custom_call.1} parent=11 // pred_region
          %232 = vsyncadd [#allocation9], 0
          %s233 = sshll.u32 %s4, 4
          %s234 = int_to_ptr.hbm [resolvable:$true] %s233
          %s235 = sshll.u32 [#allocation10], 4
          %s236 = int_to_ptr.vmem [resolvable:$true] %s235
          %241 = dma.hbm_to_vmem [thread:$0]  %s234, 256, %s236, [#allocation9], 64, 64, 4
        $region24: #{tpu_custom_call.1} parent=11 // pred_fallthru
          _
        // Predicated region
        $region25: #{tpu_custom_call.1} parent=11 // pred_check
          %p242 = pneg %p159
        $region26: #{tpu_custom_call.1} parent=11 // pred_check_branch
          %244 = sbr.rel (%p242) target = $region28
        $region27: #{tpu_custom_call.1} parent=11 // pred_region
          %246 = vsyncadd [#allocation12], 0
          %s247 = sshll.u32 %s5, 4
          %s248 = int_to_ptr.hbm [resolvable:$true] %s247
          %s249 = sshll.u32 [#allocation11], 4
          %s250 = int_to_ptr.vmem [resolvable:$true] %s249
          %255 = dma.hbm_to_vmem [thread:$0]  %s248, 256, %s250, [#allocation12], 64, 64, 4
        $region28: #{tpu_custom_call.1} parent=11 // pred_fallthru
          _
      $region12: #{tpu_custom_call.1} parent=5 // pred_fallthru
        _
      %p256 = scmp.lt.s32.totalorder %s23, 2
      // Predicated region
      $region29: #{tpu_custom_call.1} parent=5 // pred_check
        %p257 = pneg %p256
      $region30: #{tpu_custom_call.1} parent=5 // pred_check_branch
        %259 = sbr.rel (%p257) target = $region32
      $region31: #{tpu_custom_call.1} parent=5 // pred_region
        // Predicated region
        $region33: #{tpu_custom_call.1} parent=31 // pred_check
          %p260 = pneg %p43
        $region34: #{tpu_custom_call.1} parent=31 // pred_check_branch
          %262 = sbr.rel (%p260) target = $region36
        $region35: #{tpu_custom_call.1} parent=31 // pred_region
          %s263 = sand.u32 %s33, 1
          %s264 = scalar_lea.sflag [#allocation3], %s263
          %s265 = sand.u32 %s33, 1
          %s266 = smul.addr %s265, 4
          %s267 = scalar_lea.vmem [#allocation2], %s266
          %269 = vsyncadd %s264, 0
          %s270 = smul.addr %s23, 4
          %s271 = scalar_lea.hbm %s0, %s270
          %s273 = sshll.u32 %s271, 4
          %s274 = int_to_ptr.hbm [resolvable:$true] %s273
          %s275 = sshll.u32 %s267, 4
          %s276 = int_to_ptr.vmem [resolvable:$true] %s275
          %278 = dma.hbm_to_vmem [thread:$0]  %s274, 64, %s276, %s264
        $region36: #{tpu_custom_call.1} parent=31 // pred_fallthru
          _
        // Predicated region
        $region37: #{tpu_custom_call.1} parent=31 // pred_check
          %p279 = pneg %p69
        $region38: #{tpu_custom_call.1} parent=31 // pred_check_branch
          %281 = sbr.rel (%p279) target = $region40
        $region39: #{tpu_custom_call.1} parent=31 // pred_region
          %s282 = sand.u32 %s23, 1
          %s283 = scalar_lea.sflag [#allocation6], %s282
          %s284 = sand.u32 %s59, 1
          %s285 = smul.addr %s284, 4
          %s286 = scalar_lea.vmem [#allocation5], %s285
          %288 = vsyncadd %s283, 0
          %s289 = smul.addr %s23, 4
          %s290 = scalar_lea.hbm %s1, %s289
          %s292 = sshll.u32 %s290, 4
          %s293 = int_to_ptr.hbm [resolvable:$true] %s292
          %s294 = sshll.u32 %s286, 4
          %s295 = int_to_ptr.vmem [resolvable:$true] %s294
          %297 = dma.hbm_to_vmem [thread:$0]  %s293, 64, %s295, %s283
        $region40: #{tpu_custom_call.1} parent=31 // pred_fallthru
          _
      $region32: #{tpu_custom_call.1} parent=5 // pred_fallthru
        _
      %p298 = scmp.le.s32.totalorder 1, %s23
      %p299 = scmp.lt.s32.totalorder %s23, 3
      %p300 = pnand %p298, %p299
      %p301 = pneg %p300
      // Predicated region
      $region41: #{tpu_custom_call.1} parent=5 // pred_check
        _
      $region42: #{tpu_custom_call.1} parent=5 // pred_check_branch
        %303 = sbr.rel (%p300) target = $region44
      $region43: #{tpu_custom_call.1} parent=5 // pred_region
        %s304 = ssub.s32 %s23, 1
        %s305 = sand.u32 %s36, 1
        %s306 = scalar_lea.sflag [#allocation3], %s305
        %s307 = sand.u32 %s36, 1
        %s308 = smul.addr %s307, 4
        %s309 = scalar_lea.vmem [#allocation2], %s308
        // Predicated region
        $region45: #{tpu_custom_call.1} parent=43 // pred_check
          %p310 = pneg %p49
        $region46: #{tpu_custom_call.1} parent=43 // pred_check_branch
          %312 = sbr.rel (%p310) target = $region48
        $region47: #{tpu_custom_call.1} parent=43 // pred_region
          %314 = dma.done %s306, 64
        $region48: #{tpu_custom_call.1} parent=43 // pred_fallthru
          _
        %s315 = sand.u32 %s28, 1
        %s316 = scalar_lea.sflag [#allocation6], %s315
        %s317 = sand.u32 %s62, 1
        %s318 = smul.addr %s317, 4
        %s319 = scalar_lea.vmem [#allocation5], %s318
        // Predicated region
        $region49: #{tpu_custom_call.1} parent=43 // pred_check
          %p320 = pneg %p75
        $region50: #{tpu_custom_call.1} parent=43 // pred_check_branch
          %322 = sbr.rel (%p320) target = $region52
        $region51: #{tpu_custom_call.1} parent=43 // pred_region
          %324 = dma.done %s316, 64
        $region52: #{tpu_custom_call.1} parent=43 // pred_fallthru
          _
        // Predicated region
        $region53: #{tpu_custom_call.1} parent=43 // pred_check
          %p325 = pneg %p96
        $region54: #{tpu_custom_call.1} parent=43 // pred_check_branch
          %327 = sbr.rel (%p325) target = $region56
        $region55: #{tpu_custom_call.1} parent=43 // pred_region
          %329 = dma.done [#allocation6], 256
        $region56: #{tpu_custom_call.1} parent=43 // pred_fallthru
          _
        // Predicated region
        $region57: #{tpu_custom_call.1} parent=43 // pred_check
          %p330 = pneg %p117
        $region58: #{tpu_custom_call.1} parent=43 // pred_check_branch
          %332 = sbr.rel (%p330) target = $region60
        $region59: #{tpu_custom_call.1} parent=43 // pred_region
          %334 = dma.done [#allocation9], 256
        $region60: #{tpu_custom_call.1} parent=43 // pred_fallthru
          _
        // Predicated region
        $region61: #{tpu_custom_call.1} parent=43 // pred_check
          %p335 = pneg %p138
        $region62: #{tpu_custom_call.1} parent=43 // pred_check_branch
          %337 = sbr.rel (%p335) target = $region64
        $region63: #{tpu_custom_call.1} parent=43 // pred_region
          %339 = dma.done [#allocation9], 256
        $region64: #{tpu_custom_call.1} parent=43 // pred_fallthru
          _
        // Predicated region
        $region65: #{tpu_custom_call.1} parent=43 // pred_check
          %p340 = pneg %p159
        $region66: #{tpu_custom_call.1} parent=43 // pred_check_branch
          %342 = sbr.rel (%p340) target = $region68
        $region67: #{tpu_custom_call.1} parent=43 // pred_region
          %344 = dma.done [#allocation12], 256
        $region68: #{tpu_custom_call.1} parent=43 // pred_fallthru
          _
        %s345 = sand.u32 %s36, 1
        %s346 = scalar_lea.sflag [#allocation3], %s345
        %s347 = sand.u32 %s36, 1
        %s348 = smul.addr %s347, 4
        %s349 = scalar_lea.vmem [#allocation2], %s348
        %p350 = pneg %p49
        %p351 = pneg %p46
        %s352 = sand.u32 %s28, 1
        %s353 = scalar_lea.sflag [#allocation6], %s352
        %s354 = sand.u32 %s62, 1
        %s355 = smul.addr %s354, 4
        %s356 = scalar_lea.vmem [#allocation5], %s355
        %p357 = pneg %p75
        %p358 = pneg %p72
        %p359 = pneg %p96
        %p360 = pneg %p93
        %p361 = pneg %p117
        %p362 = pneg %p114
        %p363 = pneg %p138
        %p364 = pneg %p135
        %p365 = pneg %p159
        %p366 = pneg %p156
        %p367 = pneg %p185
        %p368 = pneg %p182
        %s369 = sand.u32 %s172, 1
        %s370 = scalar_lea.sflag [#allocation4], %s369
        %s371 = sand.u32 %s172, 1
        %s372 = smul.addr %s371, 8
        %s373 = scalar_lea.vmem [#allocation13], %s372
        %v375 = vld [vmem:[%s309] sm:$0xf]
        %v376 = vld [vmem:[%s319] sm:$0xf]
        %v377 = vld [vmem:[#allocation7] sm:$0xf]
        %v378 = vld [vmem:[#allocation7 + $0x4] sm:$0xf]
        %v379 = vld [vmem:[#allocation7 + $0x8] sm:$0xf]
        %v380 = vld [vmem:[#allocation7 + $0xc] sm:$0xf]
        %v385 = vunpack.c.l.b16 %v377
        %v386 = vunpack.c.l.b16 %v378
        %v387 = vunpack.c.l.b16 %v379
        %v388 = vunpack.c.l.b16 %v380
        %v389 = vpack.c.b16 %v386, %v385
        %v390 = vpack.c.b16 %v388, %v387
        %vm393 = vcmask 261120
        %v395 = vsel %vm393, %v375, 0
        %397 = vmatpush.bf16.msra.mxu0 0
        %398 = vmatpush.bf16.msra.mxu0 0
        %399 = vmatpush.bf16.msra.mxu0 0
        %400 = vmatpush.bf16.msra.mxu0 0
        %401 = vmatpush.bf16.msra.mxu0 0
        %402 = vmatpush.bf16.msra.mxu0 0
        %403 = vmatpush.bf16.msra.mxu0 %v390
        %404 = vmatpush.bf16.msra.mxu0 %v389
        %405 = vmatmul.bf16.gmra.mxu0 %v395
        %v406 = vpop.f32.mrf.mxu0
        %v407 = vadd.f32 0.0, %v406
        %v408 = vpop.f32.mrf.mxu0
        %409 = vdwg.mxu0
        %v410 = vpack.c.bf16 %v407, %v407
        %v411 = vld [vmem:[#allocation8] sm:$0xf]
        %v412 = vld [vmem:[#allocation8 + $0x4] sm:$0xf]
        %v413 = vld [vmem:[#allocation8 + $0x8] sm:$0xf]
        %v414 = vld [vmem:[#allocation8 + $0xc] sm:$0xf]
        %v419 = vunpack.c.l.b16 %v411
        %v420 = vunpack.c.l.b16 %v412
        %v421 = vunpack.c.l.b16 %v413
        %v422 = vunpack.c.l.b16 %v414
        %v423 = vpack.c.b16 %v420, %v419
        %v424 = vpack.c.b16 %v422, %v421
        %v428 = vsel %vm393, %v376, 0
        %430 = vmatpush.bf16.msra.mxu0 0
        %431 = vmatpush.bf16.msra.mxu0 0
        %432 = vmatpush.bf16.msra.mxu0 0
        %433 = vmatpush.bf16.msra.mxu0 0
        %434 = vmatpush.bf16.msra.mxu0 0
        %435 = vmatpush.bf16.msra.mxu0 0
        %436 = vmatpush.bf16.msra.mxu0 %v424
        %437 = vmatpush.bf16.msra.mxu0 %v423
        %438 = vmatmul.bf16.gmra.mxu0 %v428
        %v439 = vpop.f32.mrf.mxu0
        %v440 = vadd.f32 0.0, %v439
        %v441 = vpop.f32.mrf.mxu0
        %442 = vdwg.mxu0
        %v443 = vpack.c.bf16 %v440, %v440
        %v444 = vld [vmem:[#allocation10] sm:$0xf]
        %v445 = vld [vmem:[#allocation10 + $0x4] sm:$0xf]
        %v446 = vld [vmem:[#allocation10 + $0x8] sm:$0xf]
        %v447 = vld [vmem:[#allocation10 + $0xc] sm:$0xf]
        %v452 = vunpack.c.l.b16 %v444
        %v453 = vunpack.c.l.b16 %v445
        %v454 = vunpack.c.l.b16 %v446
        %v455 = vunpack.c.l.b16 %v447
        %v456 = vpack.c.b16 %v453, %v452
        %v457 = vpack.c.b16 %v455, %v454
        %460 = vmatpush.bf16.msra.mxu0 0
        %461 = vmatpush.bf16.msra.mxu0 0
        %462 = vmatpush.bf16.msra.mxu0 0
        %463 = vmatpush.bf16.msra.mxu0 0
        %464 = vmatpush.bf16.msra.mxu0 0
        %465 = vmatpush.bf16.msra.mxu0 0
        %466 = vmatpush.bf16.msra.mxu0 %v457
        %467 = vmatpush.bf16.msra.mxu0 %v456
        %468 = vmatmul.bf16.gmra.mxu0 %v428
        %v469 = vpop.f32.mrf.mxu0
        %v470 = vadd.f32 0.0, %v469
        %v471 = vpop.f32.mrf.mxu0
        %472 = vdwg.mxu0
        %v473 = vpack.c.bf16 %v470, %v470
        %v474 = vld [vmem:[#allocation11] sm:$0xf]
        %v475 = vld [vmem:[#allocation11 + $0x4] sm:$0xf]
        %v476 = vld [vmem:[#allocation11 + $0x8] sm:$0xf]
        %v477 = vld [vmem:[#allocation11 + $0xc] sm:$0xf]
        %vm478 = vcmask 64512
        %v480 = vsel %vm478, %v410, 0
        %v483 = vsel %vm478, %v443, 0
        %485 = vmatpush.bf16.xpose.msra.mxu0 0
        %486 = vmatpush.bf16.xpose.msra.mxu0 0
        %487 = vmatpush.bf16.xpose.msra.mxu0 0
        %488 = vmatpush.bf16.xpose.msra.mxu0 0
        %489 = vmatpush.bf16.xpose.msra.mxu0 0
        %490 = vmatpush.bf16.xpose.msra.mxu0 0
        %491 = vmatpush.bf16.xpose.msra.mxu0 0
        %492 = vmatpush.bf16.xpose.msra.mxu0 %v483
        %493 = vmatmul.bf16.gmra.mxu0 %v480
        %v494 = vpop.f32.mrf.mxu0
        %v495 = vadd.f32 0.0, %v494
        %v496 = vpop.f32.mrf.mxu0
        %497 = vdwg.mxu0
        %v498 = vsel %vm478, %v495, -inf
        %499 = vmax.xlane.f32.xlu0 %v498
        %v500 = vpop.xlane.xlu0 %499
        %v501 = vsub.f32 %v495, %v500
        %v502 = vmul.f32 %v501, 1.442695
        %v503 = vpow.pop %v502
        %v504 = vsel %vm478, %v503, 0.0
        %505 = vadd.xlane.f32.xlu0 %v504
        %v506 = vpop.xlane.xlu0 %505
        %v507 = vrcp.pop %v506
        %v508 = vmul.f32 %v503, %v507
        %v509 = vpack.c.bf16 %v508, %v508
        %v511 = vsel %vm478, %v509, 0
        %vm513 = vcmask 1043456
        %v515 = vsel %vm513, %v473, 0
        %517 = vmatpush.bf16.msra.mxu0 0
        %518 = vmatpush.bf16.msra.mxu0 0
        %519 = vmatpush.bf16.msra.mxu0 0
        %520 = vmatpush.bf16.msra.mxu0 0
        %521 = vmatpush.bf16.msra.mxu0 0
        %522 = vmatpush.bf16.msra.mxu0 0
        %523 = vmatpush.bf16.msra.mxu0 0
        %524 = vmatpush.bf16.msra.mxu0 %v515
        %525 = vmatmul.bf16.gmra.mxu0 %v511
        %v526 = vpop.f32.mrf.mxu0
        %v527 = vadd.f32 0.0, %v526
        %v528 = vpop.f32.mrf.mxu0
        %529 = vdwg.mxu0
        %v530 = vpack.c.bf16 %v527, %v527
        %v532 = vunpack.c.l.b16 %v410
        %v533 = vpack.c.b16 %v532, %v532
        %534 = vrot.lane.b32.xlu0 %v533, 120
        %v535 = vpop.permute.xlu0 %534
        %v537 = vunpack.c.l.b16 %v443
        %v538 = vpack.c.b16 %v537, %v537
        %539 = vrot.lane.b32.xlu0 %v538, 120
        %v540 = vpop.permute.xlu0 %539
        %v542 = vsel %vm478, %v535, 0
        %v545 = vsel %vm478, %v540, 0
        %547 = vmatpush.bf16.xpose.msra.mxu0 0
        %548 = vmatpush.bf16.xpose.msra.mxu0 0
        %549 = vmatpush.bf16.xpose.msra.mxu0 0
        %550 = vmatpush.bf16.xpose.msra.mxu0 0
        %551 = vmatpush.bf16.xpose.msra.mxu0 0
        %552 = vmatpush.bf16.xpose.msra.mxu0 0
        %553 = vmatpush.bf16.xpose.msra.mxu0 0
        %554 = vmatpush.bf16.xpose.msra.mxu0 %v545
        %555 = vmatmul.bf16.gmra.mxu0 %v542
        %v556 = vpop.f32.mrf.mxu0
        %v557 = vadd.f32 0.0, %v556
        %v558 = vpop.f32.mrf.mxu0
        %559 = vdwg.mxu0
        %v560 = vsel %vm478, %v557, -inf
        %561 = vmax.xlane.f32.xlu0 %v560
        %v562 = vpop.xlane.xlu0 %561
        %v563 = vsub.f32 %v557, %v562
        %v564 = vmul.f32 %v563, 1.442695
        %v565 = vpow.pop %v564
        %v566 = vsel %vm478, %v565, 0.0
        %567 = vadd.xlane.f32.xlu0 %v566
        %v568 = vpop.xlane.xlu0 %567
        %v569 = vrcp.pop %v568
        %v570 = vmul.f32 %v565, %v569
        %v571 = vpack.c.bf16 %v570, %v570
        %v573 = vunpack.c.l.b16 %v473
        %v574 = vpack.c.b16 %v573, %v573
        %575 = vrot.lane.b32.xlu0 %v574, 120
        %v576 = vpop.permute.xlu0 %575
        %v578 = vsel %vm478, %v571, 0
        %v581 = vsel %vm513, %v576, 0
        %583 = vmatpush.bf16.msra.mxu0 0
        %584 = vmatpush.bf16.msra.mxu0 0
        %585 = vmatpush.bf16.msra.mxu0 0
        %586 = vmatpush.bf16.msra.mxu0 0
        %587 = vmatpush.bf16.msra.mxu0 0
        %588 = vmatpush.bf16.msra.mxu0 0
        %589 = vmatpush.bf16.msra.mxu0 0
        %590 = vmatpush.bf16.msra.mxu0 %v581
        %591 = vmatmul.bf16.gmra.mxu0 %v578
        %v592 = vpop.f32.mrf.mxu0
        %v593 = vadd.f32 0.0, %v592
        %v594 = vpop.f32.mrf.mxu0
        %595 = vdwg.mxu0
        %v596 = vpack.c.bf16 %v593, %v593
        %v598 = vsel %vm478, %v596, 0
        %v601 = vsel %vm513, %v475, 0
        %603 = vmatpush.bf16.msra.mxu0 0
        %604 = vmatpush.bf16.msra.mxu0 0
        %605 = vmatpush.bf16.msra.mxu0 0
        %606 = vmatpush.bf16.msra.mxu0 0
        %607 = vmatpush.bf16.msra.mxu0 0
        %608 = vmatpush.bf16.msra.mxu0 0
        %609 = vmatpush.bf16.msra.mxu0 0
        %610 = vmatpush.bf16.msra.mxu0 %v601
        %611 = vmatmul.bf16.gmra.mxu0 %v598
        %v612 = vpop.f32.mrf.mxu0
        %v613 = vadd.f32 0.0, %v612
        %v614 = vpop.f32.mrf.mxu0
        %615 = vdwg.mxu0
        %v617 = vsel %vm478, %v530, 0
        %v620 = vsel %vm513, %v474, 0
        %622 = vmatpush.bf16.msra.mxu0 0
        %623 = vmatpush.bf16.msra.mxu0 0
        %624 = vmatpush.bf16.msra.mxu0 0
        %625 = vmatpush.bf16.msra.mxu0 0
        %626 = vmatpush.bf16.msra.mxu0 0
        %627 = vmatpush.bf16.msra.mxu0 0
        %628 = vmatpush.bf16.msra.mxu0 0
        %629 = vmatpush.bf16.msra.mxu0 %v620
        %630 = vmatmul.bf16.gmra.mxu0 %v617
        %v631 = vpop.f32.mrf.mxu0
        %v632 = vadd.f32 %v613, %v631
        %v633 = vpop.f32.mrf.mxu0
        %634 = vdwg.mxu0
        %635 = vrot.lane.b32.xlu0 %v533, 112
        %v636 = vpop.permute.xlu0 %635
        %637 = vrot.lane.b32.xlu0 %v538, 112
        %v638 = vpop.permute.xlu0 %637
        %v640 = vsel %vm478, %v636, 0
        %v643 = vsel %vm478, %v638, 0
        %645 = vmatpush.bf16.xpose.msra.mxu0 0
        %646 = vmatpush.bf16.xpose.msra.mxu0 0
        %647 = vmatpush.bf16.xpose.msra.mxu0 0
        %648 = vmatpush.bf16.xpose.msra.mxu0 0
        %649 = vmatpush.bf16.xpose.msra.mxu0 0
        %650 = vmatpush.bf16.xpose.msra.mxu0 0
        %651 = vmatpush.bf16.xpose.msra.mxu0 0
        %652 = vmatpush.bf16.xpose.msra.mxu0 %v643
        %653 = vmatmul.bf16.gmra.mxu0 %v640
        %v654 = vpop.f32.mrf.mxu0
        %v655 = vadd.f32 0.0, %v654
        %v656 = vpop.f32.mrf.mxu0
        %657 = vdwg.mxu0
        %v658 = vsel %vm478, %v655, -inf
        %659 = vmax.xlane.f32.xlu0 %v658
        %v660 = vpop.xlane.xlu0 %659
        %v661 = vsub.f32 %v655, %v660
        %v662 = vmul.f32 %v661, 1.442695
        %v663 = vpow.pop %v662
        %v664 = vsel %vm478, %v663, 0.0
        %665 = vadd.xlane.f32.xlu0 %v664
        %v666 = vpop.xlane.xlu0 %665
        %v667 = vrcp.pop %v666
        %v668 = vmul.f32 %v663, %v667
        %v669 = vpack.c.bf16 %v668, %v668
        %670 = vrot.lane.b32.xlu0 %v574, 112
        %v671 = vpop.permute.xlu0 %670
        %v673 = vsel %vm478, %v669, 0
        %v676 = vsel %vm513, %v671, 0
        %678 = vmatpush.bf16.msra.mxu0 0
        %679 = vmatpush.bf16.msra.mxu0 0
        %680 = vmatpush.bf16.msra.mxu0 0
        %681 = vmatpush.bf16.msra.mxu0 0
        %682 = vmatpush.bf16.msra.mxu0 0
        %683 = vmatpush.bf16.msra.mxu0 0
        %684 = vmatpush.bf16.msra.mxu0 0
        %685 = vmatpush.bf16.msra.mxu0 %v676
        %686 = vmatmul.bf16.gmra.mxu0 %v673
        %v687 = vpop.f32.mrf.mxu0
        %v688 = vadd.f32 0.0, %v687
        %v689 = vpop.f32.mrf.mxu0
        %690 = vdwg.mxu0
        %v691 = vpack.c.bf16 %v688, %v688
        %v693 = vsel %vm478, %v691, 0
        %v696 = vsel %vm513, %v476, 0
        %698 = vmatpush.bf16.msra.mxu0 0
        %699 = vmatpush.bf16.msra.mxu0 0
        %700 = vmatpush.bf16.msra.mxu0 0
        %701 = vmatpush.bf16.msra.mxu0 0
        %702 = vmatpush.bf16.msra.mxu0 0
        %703 = vmatpush.bf16.msra.mxu0 0
        %704 = vmatpush.bf16.msra.mxu0 0
        %705 = vmatpush.bf16.msra.mxu0 %v696
        %706 = vmatmul.bf16.gmra.mxu0 %v693
        %v707 = vpop.f32.mrf.mxu0
        %v708 = vadd.f32 0.0, %v707
        %v709 = vpop.f32.mrf.mxu0
        %710 = vdwg.mxu0
        %v711 = vadd.f32 %v632, %v708
        %712 = vrot.lane.b32.xlu0 %v533, 104
        %v713 = vpop.permute.xlu0 %712
        %714 = vrot.lane.b32.xlu0 %v538, 104
        %v715 = vpop.permute.xlu0 %714
        %v717 = vsel %vm478, %v713, 0
        %v720 = vsel %vm478, %v715, 0
        %722 = vmatpush.bf16.xpose.msra.mxu0 0
        %723 = vmatpush.bf16.xpose.msra.mxu0 0
        %724 = vmatpush.bf16.xpose.msra.mxu0 0
        %725 = vmatpush.bf16.xpose.msra.mxu0 0
        %726 = vmatpush.bf16.xpose.msra.mxu0 0
        %727 = vmatpush.bf16.xpose.msra.mxu0 0
        %728 = vmatpush.bf16.xpose.msra.mxu0 0
        %729 = vmatpush.bf16.xpose.msra.mxu0 %v720
        %730 = vmatmul.bf16.gmra.mxu0 %v717
        %v731 = vpop.f32.mrf.mxu0
        %v732 = vadd.f32 0.0, %v731
        %v733 = vpop.f32.mrf.mxu0
        %734 = vdwg.mxu0
        %v735 = vsel %vm478, %v732, -inf
        %736 = vmax.xlane.f32.xlu0 %v735
        %v737 = vpop.xlane.xlu0 %736
        %v738 = vsub.f32 %v732, %v737
        %v739 = vmul.f32 %v738, 1.442695
        %v740 = vpow.pop %v739
        %v741 = vsel %vm478, %v740, 0.0
        %742 = vadd.xlane.f32.xlu0 %v741
        %v743 = vpop.xlane.xlu0 %742
        %v744 = vrcp.pop %v743
        %v745 = vmul.f32 %v740, %v744
        %v746 = vpack.c.bf16 %v745, %v745
        %747 = vrot.lane.b32.xlu0 %v574, 104
        %v748 = vpop.permute.xlu0 %747
        %v750 = vsel %vm478, %v746, 0
        %v753 = vsel %vm513, %v748, 0
        %755 = vmatpush.bf16.msra.mxu0 0
        %756 = vmatpush.bf16.msra.mxu0 0
        %757 = vmatpush.bf16.msra.mxu0 0
        %758 = vmatpush.bf16.msra.mxu0 0
        %759 = vmatpush.bf16.msra.mxu0 0
        %760 = vmatpush.bf16.msra.mxu0 0
        %761 = vmatpush.bf16.msra.mxu0 0
        %762 = vmatpush.bf16.msra.mxu0 %v753
        %763 = vmatmul.bf16.gmra.mxu0 %v750
        %v764 = vpop.f32.mrf.mxu0
        %v765 = vadd.f32 0.0, %v764
        %v766 = vpop.f32.mrf.mxu0
        %767 = vdwg.mxu0
        %v768 = vpack.c.bf16 %v765, %v765
        %v770 = vsel %vm478, %v768, 0
        %v773 = vsel %vm513, %v477, 0
        %775 = vmatpush.bf16.msra.mxu0 0
        %776 = vmatpush.bf16.msra.mxu0 0
        %777 = vmatpush.bf16.msra.mxu0 0
        %778 = vmatpush.bf16.msra.mxu0 0
        %779 = vmatpush.bf16.msra.mxu0 0
        %780 = vmatpush.bf16.msra.mxu0 0
        %781 = vmatpush.bf16.msra.mxu0 0
        %782 = vmatpush.bf16.msra.mxu0 %v773
        %783 = vmatmul.bf16.gmra.mxu0 %v770
        %v784 = vpop.f32.mrf.mxu0
        %v785 = vadd.f32 0.0, %v784
        %v786 = vpop.f32.mrf.mxu0
        %787 = vdwg.mxu0
        %v788 = vadd.f32 %v711, %v785
        %789 = vst.msk [vmem:[%s373] sm:$0xff] %vm393, %v788
        %s790 = sand.u32 %s172, 1
        %s791 = scalar_lea.sflag [#allocation4], %s790
        %s792 = sand.u32 %s172, 1
        %s793 = smul.addr %s792, 8
        %s794 = scalar_lea.vmem [#allocation13], %s793
        // Predicated region
        $region69: #{tpu_custom_call.1} parent=43 // pred_check
          %p795 = pneg %p182
        $region70: #{tpu_custom_call.1} parent=43 // pred_check_branch
          %797 = sbr.rel (%p795) target = $region72
        $region71: #{tpu_custom_call.1} parent=43 // pred_region
          %799 = vsyncadd %s791, 0
          %s800 = smul.addr %s28, 8
          %s801 = scalar_lea.hbm %s6, %s800
          %s803 = sshll.u32 %s794, 4
          %s804 = int_to_ptr.vmem [resolvable:$true] %s803
          %s805 = sshll.u32 %s801, 4
          %s806 = int_to_ptr.hbm [resolvable:$true] %s805
          %808 = dma.vmem_to_hbm [thread:$0]  %s804, 128, %s806, %s791
        $region72: #{tpu_custom_call.1} parent=43 // pred_fallthru
          _
      $region44: #{tpu_custom_call.1} parent=5 // pred_fallthru
        _
      %p809 = scmp.le.s32.totalorder 2, %s23
      // Predicated region
      $region73: #{tpu_custom_call.1} parent=5 // pred_check
        %p810 = pneg %p809
      $region74: #{tpu_custom_call.1} parent=5 // pred_check_branch
        %812 = sbr.rel (%p810) target = $region76
      $region75: #{tpu_custom_call.1} parent=5 // pred_region
        %s813 = ssub.s32 %s23, 2
        // Predicated region
        $region77: #{tpu_custom_call.1} parent=75 // pred_check
          %p814 = pneg %p188
        $region78: #{tpu_custom_call.1} parent=75 // pred_check_branch
          %816 = sbr.rel (%p814) target = $region80
        $region79: #{tpu_custom_call.1} parent=75 // pred_region
          %s817 = sand.u32 %s173, 1
          %s818 = scalar_lea.sflag [#allocation4], %s817
          %s819 = sand.u32 %s173, 1
          %s820 = smul.addr %s819, 8
          %s821 = scalar_lea.vmem [#allocation13], %s820
          %823 = dma.done %s818, 128
        $region80: #{tpu_custom_call.1} parent=75 // pred_fallthru
          _
      $region76: #{tpu_custom_call.1} parent=5 // pred_fallthru
        _
    $region6: #{tpu_custom_call.1} parent=1 // loop_footer
      %s27 = sadd.s32 1, %s23
    $region7: #{tpu_custom_call.1} parent=1 // loop_footer_branch
      %22 = sbr.rel target = $region3
    $region8: #{tpu_custom_call.1} parent=1 // loop_exit
      _
    %824 = vsyncpa [#allocation3], 1
    %s825 = scalar_lea.sflag [#allocation3], 1
    %826 = vsyncpa %s825, 1
    %827 = vsyncpa [#allocation6], 1
    %s828 = scalar_lea.sflag [#allocation6], 1
    %829 = vsyncpa %s828, 1
    %830 = vsyncpa [#allocation9], 1
    %831 = vsyncpa [#allocation12], 1
    %832 = vsyncpa [#allocation4], 1
    %s833 = scalar_lea.sflag [#allocation4], 1
    %834 = vsyncpa %s833, 1

</llo_original>
